<compile_context>
chip_gen: v6e
topology: v6e:2x2x1
jax: 0.10.0
libtpu: 0.0.40
codegen_flags: <defaults>
</compile_context>

<pallas_src>
import jax
import jax.numpy as jnp
from jax import lax
from jax.experimental import pallas as pl
from jax.experimental.pallas import tpu as pltpu


def mlp_kernel(x_ref, *refs):
    """One batch tile.

    x_ref : (tb, in_dim)  f32   -- natural layout, batch on the sublane axis
    refs  : (w0, b0, w1, b1, ..., o_ref)
      wL  : (out_L, in_L) bf16  -- PyTorch-native (out, in), VMEM-resident
      bL  : (out_L, 1)    f32
      o_ref : (out_dim, tb) f32 -- batch on the lane axis (lane-dense stores)
    """
    o_ref = refs[-1]
    wb = refs[:-1]
    depth = len(wb) // 2

    # Layer 0: contract the last dim of W (out,in) with the last dim of X
    # (tb,in) -> (out, tb). Input is cast to bf16 in-kernel (free VPU filler,
    # avoids a separate XLA cast pass over x in HBM).
    w0 = wb[0][...]
    h = lax.dot_general(
        w0, x_ref[...].astype(w0.dtype),
        dimension_numbers=(((1,), (1,)), ((), ())),
        preferred_element_type=jnp.float32)
    h = jnp.maximum(h + wb[1][...], 0.0)

    # Remaining layers: keep h in f32 (accuracy); upcast the tiny weight tile.
    for l in range(1, depth):
        w = wb[2 * l][...].astype(jnp.float32)       # (out_L, in_L), tiny
        h = jnp.dot(w, h, preferred_element_type=jnp.float32) + wb[2 * l + 1][...]
        if l < depth - 1:
            h = jnp.maximum(h, 0.0)

    o_ref[...] = h.astype(o_ref.dtype)


def prepare_params(params):
    """Hoisted, one-time conversion to kernel-ready form.

    (W [out,in] f32, b [out] f32)  ->  (W [out,in] bf16, b [out,1] f32)
    Do this once at init, NOT per forward call.
    """
    return [(w.astype(jnp.bfloat16), b.reshape(-1, 1).astype(jnp.float32))
            for w, b in params]


def mlp_forward(x, kparams, *, tb=None):
    """x: [batch, in_dim] f32. kparams: output of prepare_params.

    Returns [batch, out_dim] f32.

    tb=None -> single grid step (best on single-TC v5e/v6e). On v7x, pass a
    tb that splits the batch in 2 (multiple of 128) to use both TensorCores.
    """
    batch, in_dim = x.shape
    out_dim = kparams[-1][0].shape[0]

    if tb is None:
        tb = batch                      # grid=(1,): no per-step pipeline overhead
    n_tiles = pl.cdiv(batch, tb)
    if n_tiles > 1:
        # Lane axis of the (out_dim, tb) output block must be 128-aligned.
        assert tb % 128 == 0, "tb must be a multiple of 128 when gridding"

    flat_args = [x]
    in_specs = [pl.BlockSpec((tb, in_dim), lambda i: (i, 0))]
    for w, b in kparams:
        flat_args.extend([w, b])
        # Constant index maps -> weights/biases stay resident in VMEM.
        in_specs.append(pl.BlockSpec(w.shape, lambda i: (0, 0)))
        in_specs.append(pl.BlockSpec(b.shape, lambda i: (0, 0)))

    flops = 2 * batch * sum(w.shape[0] * w.shape[1] for w, _ in kparams)
    bytes_accessed = (
        x.size * x.dtype.itemsize
        + sum(w.size * 2 + b.size * 4 for w, b in kparams)
        + out_dim * batch * 4
    )

    out = pl.pallas_call(
        mlp_kernel,
        out_shape=jax.ShapeDtypeStruct((out_dim, batch), jnp.float32),
        grid=(n_tiles,),
        in_specs=in_specs,
        out_specs=pl.BlockSpec((out_dim, tb), lambda i: (0, i)),
        compiler_params=pltpu.CompilerParams(
            dimension_semantics=("parallel",),   # v7x: shard batch over 2 TCs
        ),
        cost_estimate=pl.CostEstimate(
            flops=flops, transcendentals=0, bytes_accessed=bytes_accessed),
    )(*flat_args)

    # Back to the module's external [batch, out_dim] layout (output only).
    return out.T


def init_params(key, shp):
    """nn.Linear-style init: U(-1/sqrt(fan_in), 1/sqrt(fan_in)).

    Weights in PyTorch's native (out, in) layout; biases (out,). f32.
    """
    params = []
    for i in range(len(shp) - 1):
        fan_in, fan_out = shp[i], shp[i + 1]
        key, kw, kb = jax.random.split(key, 3)
        bound = 1.0 / jnp.sqrt(fan_in)
        w = jax.random.uniform(kw, (fan_out, fan_in), jnp.float32, -bound, bound)
        b = jax.random.uniform(kb, (fan_out,), jnp.float32, -bound, bound)
        params.append((w, b))
    return params


def mlp_reference(x, params):
    """Pure-JAX f32 reference of the same forward pass."""
    h = x
    n = len(params)
    for i, (w, b) in enumerate(params):
        h = h @ w.T + b
        if i < n - 1:
            h = jnp.maximum(h, 0.0)
    return h


if __name__ == "__main__":
    # config: in_dim=32, width=64, depth=3, out_dim=16, activation=ReLU
    in_dim, width, depth, out_dim = 32, 64, 3, 16
    shp = [in_dim] + [width] * (depth - 1) + [out_dim]
    batch = 256            # small; single grid step (tb = batch)

    key = jax.random.PRNGKey(0)
    key, kx = jax.random.split(key)
    x = jax.random.normal(kx, (batch, in_dim), dtype=jnp.float32)
    params = init_params(key, shp)

    # One-time, hoisted out of the per-call path.
    kparams = prepare_params(params)

    out = mlp_forward(x, kparams)
    out = jax.block_until_ready(out)

    ref = mlp_reference(x, params)
    assert out.shape == (batch, out_dim)
    # bf16 weights / input quantization -> loosened tolerance vs f32 reference.
    assert jnp.allclose(out, ref, atol=2e-2, rtol=2e-2), "mismatch vs reference"

    print("KERNEL_OK")
</pallas_src>

<mosaic_0001>
module attributes {stable_mosaic.version = 11 : i64} {
  func.func @mlp_kernel(%arg0: i32, %arg1: memref<256x32xf32, #tpu.memory_space<vmem>>, %arg2: memref<64x32xbf16, #tpu.memory_space<vmem>>, %arg3: memref<64x1xf32, #tpu.memory_space<vmem>>, %arg4: memref<64x64xbf16, #tpu.memory_space<vmem>>, %arg5: memref<64x1xf32, #tpu.memory_space<vmem>>, %arg6: memref<16x64xbf16, #tpu.memory_space<vmem>>, %arg7: memref<16x1xf32, #tpu.memory_space<vmem>>, %arg8: memref<16x256xf32, #tpu.memory_space<vmem>>) attributes {dimension_semantics = [#tpu.dimension_semantics<parallel>], iteration_bounds = array<i64: 1>, scalar_prefetch = 0 : i64, scratch_operands = 0 : i64, tpu.core_type = #tpu.core_type<tc>, window_params = [{transform_indices = @transform_0, window_bounds = array<i64: 256, 32>}, {pipeline_mode = #tpu.pipeline_mode<synchronous>, transform_indices = @transform_1, window_bounds = array<i64: 64, 32>}, {pipeline_mode = #tpu.pipeline_mode<synchronous>, transform_indices = @transform_2, window_bounds = array<i64: 64, 1>}, {pipeline_mode = #tpu.pipeline_mode<synchronous>, transform_indices = @transform_3, window_bounds = array<i64: 64, 64>}, {pipeline_mode = #tpu.pipeline_mode<synchronous>, transform_indices = @transform_4, window_bounds = array<i64: 64, 1>}, {pipeline_mode = #tpu.pipeline_mode<synchronous>, transform_indices = @transform_5, window_bounds = array<i64: 16, 64>}, {pipeline_mode = #tpu.pipeline_mode<synchronous>, transform_indices = @transform_6, window_bounds = array<i64: 16, 1>}, {transform_indices = @transform_7, window_bounds = array<i64: 16, 256>}]} {
    %c0 = arith.constant 0 : index
    %c0_0 = arith.constant 0 : index
    %0 = vector.load %arg2[%c0, %c0_0] : memref<64x32xbf16, #tpu.memory_space<vmem>>, vector<64x32xbf16>
    %c0_1 = arith.constant 0 : index
    %c0_2 = arith.constant 0 : index
    %1 = vector.load %arg1[%c0_1, %c0_2] : memref<256x32xf32, #tpu.memory_space<vmem>>, vector<256x32xf32>
    %2 = arith.truncf %1 : vector<256x32xf32> to vector<256x32xbf16>
    %cst = arith.constant dense<0.000000e+00> : vector<64x256xf32>
    %3 = tpu.matmul %0, %2, %cst {dimension_numbers = #tpu.dot_dimension_numbers<[1], [1], [0], [0], [0, 0, 1, 0], [], []>} : vector<64x32xbf16>, vector<256x32xbf16>, vector<64x256xf32> -> vector<64x256xf32>
    %c0_3 = arith.constant 0 : index
    %c0_4 = arith.constant 0 : index
    %4 = vector.load %arg3[%c0_3, %c0_4] : memref<64x1xf32, #tpu.memory_space<vmem>>, vector<64x1xf32>
    %5 = vector.broadcast %4 : vector<64x1xf32> to vector<64x256xf32>
    %6 = arith.addf %3, %5 : vector<64x256xf32>
    %cst_5 = arith.constant 0.000000e+00 : f32
    %7 = vector.broadcast %cst_5 : f32 to vector<64x256xf32>
    %8 = arith.maximumf %6, %7 : vector<64x256xf32>
    %c0_6 = arith.constant 0 : index
    %c0_7 = arith.constant 0 : index
    %9 = vector.load %arg4[%c0_6, %c0_7] : memref<64x64xbf16, #tpu.memory_space<vmem>>, vector<64x64xbf16>
    %10 = arith.extf %9 : vector<64x64xbf16> to vector<64x64xf32>
    %cst_8 = arith.constant dense<0.000000e+00> : vector<64x256xf32>
    %11 = tpu.matmul %10, %8, %cst_8 {dimension_numbers = #tpu.dot_dimension_numbers<[1], [0], [0], [1], [0, 0, 1, 1], [], []>} : vector<64x64xf32>, vector<64x256xf32>, vector<64x256xf32> -> vector<64x256xf32>
    %c0_9 = arith.constant 0 : index
    %c0_10 = arith.constant 0 : index
    %12 = vector.load %arg5[%c0_9, %c0_10] : memref<64x1xf32, #tpu.memory_space<vmem>>, vector<64x1xf32>
    %13 = vector.broadcast %12 : vector<64x1xf32> to vector<64x256xf32>
    %14 = arith.addf %11, %13 : vector<64x256xf32>
    %cst_11 = arith.constant 0.000000e+00 : f32
    %15 = vector.broadcast %cst_11 : f32 to vector<64x256xf32>
    %16 = arith.maximumf %14, %15 : vector<64x256xf32>
    %c0_12 = arith.constant 0 : index
    %c0_13 = arith.constant 0 : index
    %17 = vector.load %arg6[%c0_12, %c0_13] : memref<16x64xbf16, #tpu.memory_space<vmem>>, vector<16x64xbf16>
    %18 = arith.extf %17 : vector<16x64xbf16> to vector<16x64xf32>
    %cst_14 = arith.constant dense<0.000000e+00> : vector<16x256xf32>
    %19 = tpu.matmul %18, %16, %cst_14 {dimension_numbers = #tpu.dot_dimension_numbers<[1], [0], [0], [1], [0, 0, 1, 1], [], []>} : vector<16x64xf32>, vector<64x256xf32>, vector<16x256xf32> -> vector<16x256xf32>
    %c0_15 = arith.constant 0 : index
    %c0_16 = arith.constant 0 : index
    %20 = vector.load %arg7[%c0_15, %c0_16] : memref<16x1xf32, #tpu.memory_space<vmem>>, vector<16x1xf32>
    %21 = vector.broadcast %20 : vector<16x1xf32> to vector<16x256xf32>
    %22 = arith.addf %19, %21 : vector<16x256xf32>
    %c0_17 = arith.constant 0 : index
    %c0_18 = arith.constant 0 : index
    %23 = vector.load %arg8[%c0_17, %c0_18] : memref<16x256xf32, #tpu.memory_space<vmem>>, vector<16x256xf32>
    tpu.vector_store %arg8[%c0_17, %c0_18], %22 {strides = array<i32>} : memref<16x256xf32, #tpu.memory_space<vmem>>, vector<16x256xf32>,
    return
  }
  func.func @transform_0(%arg0: i32) -> (i32, i32) {
    %c0_i32 = arith.constant 0 : i32
    %c0_i32_0 = arith.constant 0 : i32
    return %arg0, %c0_i32 : i32, i32
  }
  func.func @transform_1(%arg0: i32) -> (i32, i32) {
    %c0_i32 = arith.constant 0 : i32
    %c0_i32_0 = arith.constant 0 : i32
    %c0_i32_1 = arith.constant 0 : i32
    return %c0_i32, %c0_i32_0 : i32, i32
  }
  func.func @transform_2(%arg0: i32) -> (i32, i32) {
    %c0_i32 = arith.constant 0 : i32
    %c0_i32_0 = arith.constant 0 : i32
    %c0_i32_1 = arith.constant 0 : i32
    return %c0_i32, %c0_i32_0 : i32, i32
  }
  func.func @transform_3(%arg0: i32) -> (i32, i32) {
    %c0_i32 = arith.constant 0 : i32
    %c0_i32_0 = arith.constant 0 : i32
    %c0_i32_1 = arith.constant 0 : i32
    return %c0_i32, %c0_i32_0 : i32, i32
  }
  func.func @transform_4(%arg0: i32) -> (i32, i32) {
    %c0_i32 = arith.constant 0 : i32
    %c0_i32_0 = arith.constant 0 : i32
    %c0_i32_1 = arith.constant 0 : i32
    return %c0_i32, %c0_i32_0 : i32, i32
  }
  func.func @transform_5(%arg0: i32) -> (i32, i32) {
    %c0_i32 = arith.constant 0 : i32
    %c0_i32_0 = arith.constant 0 : i32
    %c0_i32_1 = arith.constant 0 : i32
    return %c0_i32, %c0_i32_0 : i32, i32
  }
  func.func @transform_6(%arg0: i32) -> (i32, i32) {
    %c0_i32 = arith.constant 0 : i32
    %c0_i32_0 = arith.constant 0 : i32
    %c0_i32_1 = arith.constant 0 : i32
    return %c0_i32, %c0_i32_0 : i32, i32
  }
  func.func @transform_7(%arg0: i32) -> (i32, i32) {
    %c0_i32 = arith.constant 0 : i32
    %c0_i32_0 = arith.constant 0 : i32
    return %c0_i32, %arg0 : i32, i32
  }
}

</mosaic_0001>

<llo_original>
// kernel: tpu_custom_call.1
$region0: #{tpu_custom_call.1}
  #allocation0 [shape = 'u32[]', space=smem, size = 0x4, offset = 0x4, fixed_abs, tag = 'smem constant byte address 0x4 - core index']
  #allocation1 [shape = 'u32[144,128]{1,0:T(1,128)}', space=vmem, size = 0x12000, scoped, tag = 'internal scratch']
  %s0 = inlined_call_operand.vmem [shape: f32[256,32], index: 0, kind: input, shape index: {}]
  %s1 = inlined_call_operand.vmem [shape: bf16[64,32], index: 1, kind: input, shape index: {}]
  %s2 = inlined_call_operand.vmem [shape: f32[64,1], index: 2, kind: input, shape index: {}]
  %s3 = inlined_call_operand.vmem [shape: bf16[64,64], index: 3, kind: input, shape index: {}]
  %s4 = inlined_call_operand.vmem [shape: f32[64,1], index: 4, kind: input, shape index: {}]
  %s5 = inlined_call_operand.vmem [shape: bf16[16,64], index: 5, kind: input, shape index: {}]
  %s6 = inlined_call_operand.vmem [shape: f32[16,1], index: 6, kind: input, shape index: {}]
  %s7 = inlined_call_operand.hbm [shape: f32[16,256], index: 7, kind: output, shape index: {}]
  %s8 = sld [smem:[#allocation0]]
  $region38: #{tpu_custom_call.1} parent=0
    _
  %s10 = ssub.s32 1, %s8
  %s11 = scalar_select 0, %s10, %s8
  $region1: #{tpu_custom_call.1} parent=0
    #allocation2 [shape = 'u8[16384]{0}', space=vmem, size = 0x4000, scoped, tag = 'output window, operand 0, single buffered']
    #allocation3 [shape = 's32[1]{0}', space=sflag, size = 0x4, scoped, tag = 'scoped memory for tpu_custom_call.1']
    %12 = vsyncpa [#allocation3], 0
    // Predicated region
    $region2: #{tpu_custom_call.1} parent=1 // pred_check
      _
    $region3: #{tpu_custom_call.1} parent=1 // pred_check_branch
      %14 = sbr.rel (0) target = $region5
    $region4: #{tpu_custom_call.1} parent=1 // pred_region
      _
    $region5: #{tpu_custom_call.1} parent=1 // pred_fallthru
      _
    // Predicated region
    $region6: #{tpu_custom_call.1} parent=1 // pred_check
      _
    $region7: #{tpu_custom_call.1} parent=1 // pred_check_branch
      %16 = sbr.rel (0) target = $region9
    $region8: #{tpu_custom_call.1} parent=1 // pred_region
      _
    $region9: #{tpu_custom_call.1} parent=1 // pred_fallthru
      _
    // Predicated region
    $region10: #{tpu_custom_call.1} parent=1 // pred_check
      _
    $region11: #{tpu_custom_call.1} parent=1 // pred_check_branch
      %18 = sbr.rel (0) target = $region13
    $region12: #{tpu_custom_call.1} parent=1 // pred_region
      _
    $region13: #{tpu_custom_call.1} parent=1 // pred_fallthru
      _
    // Predicated region
    $region14: #{tpu_custom_call.1} parent=1 // pred_check
      _
    $region15: #{tpu_custom_call.1} parent=1 // pred_check_branch
      %20 = sbr.rel (0) target = $region17
    $region16: #{tpu_custom_call.1} parent=1 // pred_region
      _
    $region17: #{tpu_custom_call.1} parent=1 // pred_fallthru
      _
    // Predicated region
    $region18: #{tpu_custom_call.1} parent=1 // pred_check
      _
    $region19: #{tpu_custom_call.1} parent=1 // pred_check_branch
      %22 = sbr.rel (0) target = $region21
    $region20: #{tpu_custom_call.1} parent=1 // pred_region
      _
    $region21: #{tpu_custom_call.1} parent=1 // pred_fallthru
      _
    // Predicated region
    $region22: #{tpu_custom_call.1} parent=1 // pred_check
      _
    $region23: #{tpu_custom_call.1} parent=1 // pred_check_branch
      %24 = sbr.rel (0) target = $region25
    $region24: #{tpu_custom_call.1} parent=1 // pred_region
      _
    $region25: #{tpu_custom_call.1} parent=1 // pred_fallthru
      _
    // Predicated region
    $region26: #{tpu_custom_call.1} parent=1 // pred_check
      _
    $region27: #{tpu_custom_call.1} parent=1 // pred_check_branch
      %26 = sbr.rel (0) target = $region29
    $region28: #{tpu_custom_call.1} parent=1 // pred_region
      _
    $region29: #{tpu_custom_call.1} parent=1 // pred_fallthru
      _
    %v28 = vld [vmem:[%s1] sm:$0xf]
    %v29 = vld [vmem:[%s1 + $0x4] sm:$0xf]
    %v30 = vld [vmem:[%s1 + $0x8] sm:$0xf]
    %v31 = vld [vmem:[%s1 + $0xc] sm:$0xf]
    %v32 = vld [vmem:[%s1 + $0x10] sm:$0xf]
    %v33 = vld [vmem:[%s1 + $0x14] sm:$0xf]
    %v34 = vld [vmem:[%s1 + $0x18] sm:$0xf]
    %v35 = vld [vmem:[%s1 + $0x1c] sm:$0xf]
    %v36 = vld [vmem:[%s0] sm:$0xff]
    %v37 = vld [vmem:[%s0 + $0x8] sm:$0xff]
    %v38 = vld [vmem:[%s0 + $0x10] sm:$0xff]
    %v39 = vld [vmem:[%s0 + $0x18] sm:$0xff]
    %v40 = vld [vmem:[%s0 + $0x20] sm:$0xff]
    %v41 = vld [vmem:[%s0 + $0x28] sm:$0xff]
    %v42 = vld [vmem:[%s0 + $0x30] sm:$0xff]
    %v43 = vld [vmem:[%s0 + $0x38] sm:$0xff]
    %v44 = vld [vmem:[%s0 + $0x40] sm:$0xff]
    %v45 = vld [vmem:[%s0 + $0x48] sm:$0xff]
    %v46 = vld [vmem:[%s0 + $0x50] sm:$0xff]
    %v47 = vld [vmem:[%s0 + $0x58] sm:$0xff]
    %v48 = vld [vmem:[%s0 + $0x60] sm:$0xff]
    %v49 = vld [vmem:[%s0 + $0x68] sm:$0xff]
    %v50 = vld [vmem:[%s0 + $0x70] sm:$0xff]
    %v51 = vld [vmem:[%s0 + $0x78] sm:$0xff]
    %v52 = vld [vmem:[%s0 + $0x80] sm:$0xff]
    %v53 = vld [vmem:[%s0 + $0x88] sm:$0xff]
    %v54 = vld [vmem:[%s0 + $0x90] sm:$0xff]
    %v55 = vld [vmem:[%s0 + $0x98] sm:$0xff]
    %v56 = vld [vmem:[%s0 + $0xa0] sm:$0xff]
    %v57 = vld [vmem:[%s0 + $0xa8] sm:$0xff]
    %v58 = vld [vmem:[%s0 + $0xb0] sm:$0xff]
    %v59 = vld [vmem:[%s0 + $0xb8] sm:$0xff]
    %v60 = vld [vmem:[%s0 + $0xc0] sm:$0xff]
    %v61 = vld [vmem:[%s0 + $0xc8] sm:$0xff]
    %v62 = vld [vmem:[%s0 + $0xd0] sm:$0xff]
    %v63 = vld [vmem:[%s0 + $0xd8] sm:$0xff]
    %v64 = vld [vmem:[%s0 + $0xe0] sm:$0xff]
    %v65 = vld [vmem:[%s0 + $0xe8] sm:$0xff]
    %v66 = vld [vmem:[%s0 + $0xf0] sm:$0xff]
    %v67 = vld [vmem:[%s0 + $0xf8] sm:$0xff]
    %v68 = vpack.c.bf16 %v37, %v36
    %v69 = vpack.c.bf16 %v39, %v38
    %v70 = vpack.c.bf16 %v41, %v40
    %v71 = vpack.c.bf16 %v43, %v42
    %v72 = vpack.c.bf16 %v45, %v44
    %v73 = vpack.c.bf16 %v47, %v46
    %v74 = vpack.c.bf16 %v49, %v48
    %v75 = vpack.c.bf16 %v51, %v50
    %v76 = vpack.c.bf16 %v53, %v52
    %v77 = vpack.c.bf16 %v55, %v54
    %v78 = vpack.c.bf16 %v57, %v56
    %v79 = vpack.c.bf16 %v59, %v58
    %v80 = vpack.c.bf16 %v61, %v60
    %v81 = vpack.c.bf16 %v63, %v62
    %v82 = vpack.c.bf16 %v65, %v64
    %v83 = vpack.c.bf16 %v67, %v66
    %v84 = vld [vmem:[%s2] sm:$0xff]
    %v85 = vld [vmem:[%s2 + $0x8] sm:$0xff]
    %v86 = vld [vmem:[%s2 + $0x10] sm:$0xff]
    %v87 = vld [vmem:[%s2 + $0x18] sm:$0xff]
    %v88 = vld [vmem:[%s2 + $0x20] sm:$0xff]
    %v89 = vld [vmem:[%s2 + $0x28] sm:$0xff]
    %v90 = vld [vmem:[%s2 + $0x30] sm:$0xff]
    %v91 = vld [vmem:[%s2 + $0x38] sm:$0xff]
    %93 = vset.pattern.permute.xlu0 0
    %94 = vperm.xlu0 %93, %v84
    %v95 = vpop.permute.xlu0 %94
    %98 = vset.pattern.permute.xlu0 0
    %99 = vperm.xlu0 %98, %v85
    %v100 = vpop.permute.xlu0 %99
    %103 = vset.pattern.permute.xlu0 0
    %104 = vperm.xlu0 %103, %v86
    %v105 = vpop.permute.xlu0 %104
    %108 = vset.pattern.permute.xlu0 0
    %109 = vperm.xlu0 %108, %v87
    %v110 = vpop.permute.xlu0 %109
    %113 = vset.pattern.permute.xlu0 0
    %114 = vperm.xlu0 %113, %v88
    %v115 = vpop.permute.xlu0 %114
    %118 = vset.pattern.permute.xlu0 0
    %119 = vperm.xlu0 %118, %v89
    %v120 = vpop.permute.xlu0 %119
    %123 = vset.pattern.permute.xlu0 0
    %124 = vperm.xlu0 %123, %v90
    %v125 = vpop.permute.xlu0 %124
    %128 = vset.pattern.permute.xlu0 0
    %129 = vperm.xlu0 %128, %v91
    %v130 = vpop.permute.xlu0 %129
    %v140 = vunpack.c.l.b16 %v28
    %v141 = vunpack.c.l.b16 %v29
    %v142 = vunpack.c.l.b16 %v30
    %v143 = vunpack.c.l.b16 %v31
    %v144 = vunpack.c.l.b16 %v32
    %v145 = vunpack.c.l.b16 %v33
    %v146 = vunpack.c.l.b16 %v34
    %v147 = vunpack.c.l.b16 %v35
    %v148 = vpack.c.b16 %v141, %v140
    %v149 = vpack.c.b16 %v143, %v142
    %v150 = vpack.c.b16 %v145, %v144
    %v151 = vpack.c.b16 %v147, %v146
    %vm152 = vcmask 261120
    %v154 = vsel %vm152, %v148, 0
    %v157 = vsel %vm152, %v149, 0
    %v160 = vsel %vm152, %v150, 0
    %v163 = vsel %vm152, %v151, 0
    %v166 = vsel %vm152, %v68, 0
    %v169 = vsel %vm152, %v69, 0
    %v172 = vsel %vm152, %v70, 0
    %v175 = vsel %vm152, %v71, 0
    %v178 = vsel %vm152, %v72, 0
    %v181 = vsel %vm152, %v73, 0
    %v184 = vsel %vm152, %v74, 0
    %v187 = vsel %vm152, %v75, 0
    %v190 = vsel %vm152, %v76, 0
    %v193 = vsel %vm152, %v77, 0
    %v196 = vsel %vm152, %v78, 0
    %v199 = vsel %vm152, %v79, 0
    %v202 = vsel %vm152, %v80, 0
    %v205 = vsel %vm152, %v81, 0
    %v208 = vsel %vm152, %v82, 0
    %v211 = vsel %vm152, %v83, 0
    %213 = vmatprep.subr.bf16.mxu0 0
    %214 = vmatpush1.bf16.xpose.msra.mxu0 %v187
    %215 = vmatprep.subr.bf16.mxu0 0
    %216 = vmatpush1.bf16.xpose.msra.mxu0 %v184
    %217 = vmatprep.subr.bf16.mxu0 0
    %218 = vmatpush1.bf16.xpose.msra.mxu0 %v181
    %219 = vmatprep.subr.bf16.mxu0 0
    %220 = vmatpush1.bf16.xpose.msra.mxu0 %v178
    %221 = vmatprep.subr.bf16.mxu0 0
    %222 = vmatpush1.bf16.xpose.msra.mxu0 %v175
    %223 = vmatprep.subr.bf16.mxu0 0
    %224 = vmatpush1.bf16.xpose.msra.mxu0 %v172
    %225 = vmatprep.subr.bf16.mxu0 0
    %226 = vmatpush1.bf16.xpose.msra.mxu0 %v169
    %227 = vmatprep.subr.bf16.mxu0 0
    %228 = vmatpush1.bf16.xpose.msra.mxu0 %v166
    %229 = vmatprep.subr.bf16.mxu0 0
    %230 = vmatpush2.bf16.xpose.msra.mxu0 %v211
    %231 = vmatprep.subr.bf16.mxu0 0
    %232 = vmatpush2.bf16.xpose.msra.mxu0 %v208
    %233 = vmatprep.subr.bf16.mxu0 0
    %234 = vmatpush2.bf16.xpose.msra.mxu0 %v205
    %235 = vmatprep.subr.bf16.mxu0 0
    %236 = vmatpush2.bf16.xpose.msra.mxu0 %v202
    %237 = vmatprep.subr.bf16.mxu0 0
    %238 = vmatpush2.bf16.xpose.msra.mxu0 %v199
    %239 = vmatprep.subr.bf16.mxu0 0
    %240 = vmatpush2.bf16.xpose.msra.mxu0 %v196
    %241 = vmatprep.subr.bf16.mxu0 0
    %242 = vmatpush2.bf16.xpose.msra.mxu0 %v193
    %243 = vmatprep.subr.bf16.mxu0 0
    %244 = vmatpush2.bf16.xpose.msra.mxu0 %v190
    %245 = vmatprep.mubr.bf16.mxu0 0
    %246 = vmatmul.mubr.bf16.gmra.mxu0 %v154
    %v247 = vpop.f32.mrf.mxu0
    %v248 = vadd.f32 %v95, %v247
    %v249 = vpop.f32.mrf.mxu0
    %v250 = vadd.f32 %v95, %v249
    %v251 = vpop.f32.mrf.mxu0
    %v252 = vadd.f32 %v100, %v251
    %v253 = vpop.f32.mrf.mxu0
    %v254 = vadd.f32 %v100, %v253
    %255 = vmatprep.mubr.bf16.mxu0 0
    %256 = vmatmul.mubr.bf16.gmra.mxu0 %v157
    %v257 = vpop.f32.mrf.mxu0
    %v258 = vadd.f32 %v105, %v257
    %v259 = vpop.f32.mrf.mxu0
    %v260 = vadd.f32 %v105, %v259
    %v261 = vpop.f32.mrf.mxu0
    %v262 = vadd.f32 %v110, %v261
    %v263 = vpop.f32.mrf.mxu0
    %v264 = vadd.f32 %v110, %v263
    %265 = vmatprep.mubr.bf16.mxu0 0
    %266 = vmatmul.mubr.bf16.gmra.mxu0 %v160
    %v267 = vpop.f32.mrf.mxu0
    %v268 = vadd.f32 %v115, %v267
    %v269 = vpop.f32.mrf.mxu0
    %v270 = vadd.f32 %v115, %v269
    %v271 = vpop.f32.mrf.mxu0
    %v272 = vadd.f32 %v120, %v271
    %v273 = vpop.f32.mrf.mxu0
    %v274 = vadd.f32 %v120, %v273
    %275 = vmatprep.mubr.bf16.mxu0 0
    %276 = vmatmul.mubr.bf16.gmra.mxu0 %v163
    %v277 = vpop.f32.mrf.mxu0
    %v278 = vadd.f32 %v125, %v277
    %v279 = vpop.f32.mrf.mxu0
    %v280 = vadd.f32 %v125, %v279
    %v281 = vpop.f32.mrf.mxu0
    %v282 = vadd.f32 %v130, %v281
    %v283 = vpop.f32.mrf.mxu0
    %v284 = vadd.f32 %v130, %v283
    %285 = vdwg.mxu0
    %v286 = vmax.f32 %v248, 0.0
    %v287 = vmax.f32 %v250, 0.0
    %v288 = vmax.f32 %v252, 0.0
    %v289 = vmax.f32 %v254, 0.0
    %v290 = vmax.f32 %v258, 0.0
    %v291 = vmax.f32 %v260, 0.0
    %v292 = vmax.f32 %v262, 0.0
    %v293 = vmax.f32 %v264, 0.0
    %v294 = vmax.f32 %v268, 0.0
    %v295 = vmax.f32 %v270, 0.0
    %v296 = vmax.f32 %v272, 0.0
    %v297 = vmax.f32 %v274, 0.0
    %v298 = vmax.f32 %v278, 0.0
    %v299 = vmax.f32 %v280, 0.0
    %v300 = vmax.f32 %v282, 0.0
    %v301 = vmax.f32 %v284, 0.0
    %v302 = vld [vmem:[%s3] sm:$0xf]
    %v303 = vld [vmem:[%s3 + $0x4] sm:$0xf]
    %v304 = vld [vmem:[%s3 + $0x8] sm:$0xf]
    %v305 = vld [vmem:[%s3 + $0xc] sm:$0xf]
    %v306 = vld [vmem:[%s3 + $0x10] sm:$0xf]
    %v307 = vld [vmem:[%s3 + $0x14] sm:$0xf]
    %v308 = vld [vmem:[%s3 + $0x18] sm:$0xf]
    %v309 = vld [vmem:[%s3 + $0x1c] sm:$0xf]
    %v310 = vunpack.c.l.bf16 %v302
    %v311 = vunpack.c.l.bf16 %v303
    %v312 = vunpack.c.l.bf16 %v304
    %v313 = vunpack.c.l.bf16 %v305
    %v314 = vunpack.c.l.bf16 %v306
    %v315 = vunpack.c.l.bf16 %v307
    %v316 = vunpack.c.l.bf16 %v308
    %v317 = vunpack.c.l.bf16 %v309
    %v318 = vld [vmem:[%s4] sm:$0xff]
    %v319 = vld [vmem:[%s4 + $0x8] sm:$0xff]
    %v320 = vld [vmem:[%s4 + $0x10] sm:$0xff]
    %v321 = vld [vmem:[%s4 + $0x18] sm:$0xff]
    %v322 = vld [vmem:[%s4 + $0x20] sm:$0xff]
    %v323 = vld [vmem:[%s4 + $0x28] sm:$0xff]
    %v324 = vld [vmem:[%s4 + $0x30] sm:$0xff]
    %v325 = vld [vmem:[%s4 + $0x38] sm:$0xff]
    %327 = vset.pattern.permute.xlu0 0
    %328 = vperm.xlu0 %327, %v318
    %v329 = vpop.permute.xlu0 %328
    %332 = vset.pattern.permute.xlu0 0
    %333 = vperm.xlu0 %332, %v319
    %v334 = vpop.permute.xlu0 %333
    %337 = vset.pattern.permute.xlu0 0
    %338 = vperm.xlu0 %337, %v320
    %v339 = vpop.permute.xlu0 %338
    %342 = vset.pattern.permute.xlu0 0
    %343 = vperm.xlu0 %342, %v321
    %v344 = vpop.permute.xlu0 %343
    %347 = vset.pattern.permute.xlu0 0
    %348 = vperm.xlu0 %347, %v322
    %v349 = vpop.permute.xlu0 %348
    %352 = vset.pattern.permute.xlu0 0
    %353 = vperm.xlu0 %352, %v323
    %v354 = vpop.permute.xlu0 %353
    %357 = vset.pattern.permute.xlu0 0
    %358 = vperm.xlu0 %357, %v324
    %v359 = vpop.permute.xlu0 %358
    %362 = vset.pattern.permute.xlu0 0
    %363 = vperm.xlu0 %362, %v325
    %v364 = vpop.permute.xlu0 %363
    %vm366 = vcmask 523264
    %v368 = vsel %vm366, %v310, 0
    %v371 = vsel %vm366, %v311, 0
    %v374 = vsel %vm366, %v312, 0
    %v377 = vsel %vm366, %v313, 0
    %v380 = vsel %vm366, %v314, 0
    %v383 = vsel %vm366, %v315, 0
    %v386 = vsel %vm366, %v316, 0
    %v389 = vsel %vm366, %v317, 0
    %391 = vmatprep.subr.mxu0 0.0
    %392 = vmatpush1.msra.mxu0 0.0
    %393 = vmatprep.subr.mxu0 0.0
    %394 = vmatpush1.msra.mxu0 0.0
    %395 = vmatprep.subr.mxu0 0.0
    %396 = vmatpush1.msra.mxu0 0.0
    %397 = vmatprep.subr.mxu0 0.0
    %398 = vmatpush1.msra.mxu0 0.0
    %399 = vmatprep.subr.mxu0 0.0
    %400 = vmatpush1.msra.mxu0 0.0
    %401 = vmatprep.subr.mxu0 0.0
    %402 = vmatpush1.msra.mxu0 0.0
    %403 = vmatprep.subr.mxu0 0.0
    %404 = vmatpush1.msra.mxu0 0.0
    %405 = vmatprep.subr.mxu0 0.0
    %406 = vmatpush1.msra.mxu0 0.0
    %407 = vmatprep.subr.mxu0 %v301
    %408 = vmatpush1.msra.mxu0 %v300
    %409 = vmatprep.subr.mxu0 %v299
    %410 = vmatpush1.msra.mxu0 %v298
    %411 = vmatprep.subr.mxu0 %v297
    %412 = vmatpush1.msra.mxu0 %v296
    %413 = vmatprep.subr.mxu0 %v295
    %414 = vmatpush1.msra.mxu0 %v294
    %415 = vmatprep.subr.mxu0 %v293
    %416 = vmatpush1.msra.mxu0 %v292
    %417 = vmatprep.subr.mxu0 %v291
    %418 = vmatpush1.msra.mxu0 %v290
    %419 = vmatprep.subr.mxu0 %v289
    %420 = vmatpush1.msra.mxu0 %v288
    %421 = vmatprep.subr.mxu0 %v287
    %422 = vmatpush1.msra.mxu0 %v286
    %423 = vmatprep.subr.mxu0 0.0
    %424 = vmatpush2.msra.mxu0 0.0
    %425 = vmatprep.subr.mxu0 0.0
    %426 = vmatpush2.msra.mxu0 0.0
    %427 = vmatprep.subr.mxu0 0.0
    %428 = vmatpush2.msra.mxu0 0.0
    %429 = vmatprep.subr.mxu0 0.0
    %430 = vmatpush2.msra.mxu0 0.0
    %431 = vmatprep.subr.mxu0 0.0
    %432 = vmatpush2.msra.mxu0 0.0
    %433 = vmatprep.subr.mxu0 0.0
    %434 = vmatpush2.msra.mxu0 0.0
    %435 = vmatprep.subr.mxu0 0.0
    %436 = vmatpush2.msra.mxu0 0.0
    %437 = vmatprep.subr.mxu0 0.0
    %438 = vmatpush2.msra.mxu0 0.0
    %439 = vmatprep.subr.mxu0 0.0
    %440 = vmatpush2.msra.mxu0 0.0
    %441 = vmatprep.subr.mxu0 0.0
    %442 = vmatpush2.msra.mxu0 0.0
    %443 = vmatprep.subr.mxu0 0.0
    %444 = vmatpush2.msra.mxu0 0.0
    %445 = vmatprep.subr.mxu0 0.0
    %446 = vmatpush2.msra.mxu0 0.0
    %447 = vmatprep.subr.mxu0 0.0
    %448 = vmatpush2.msra.mxu0 0.0
    %449 = vmatprep.subr.mxu0 0.0
    %450 = vmatpush2.msra.mxu0 0.0
    %451 = vmatprep.subr.mxu0 0.0
    %452 = vmatpush2.msra.mxu0 0.0
    %453 = vmatprep.subr.mxu0 0.0
    %454 = vmatpush2.msra.mxu0 0.0
    %455 = vmatprep.mubr.f32.mxu0 0.0
    %456 = vmatmul.mubr.f32.gmra.mxu0 %v368
    %v457 = vpop.f32.mrf.mxu0
    %v458 = vadd.f32 %v329, %v457
    %v459 = vpop.f32.mrf.mxu0
    %v460 = vadd.f32 %v329, %v459
    %461 = vmatprep.mubr.f32.mxu0 0.0
    %462 = vmatmul.mubr.f32.gmra.mxu0 %v371
    %v463 = vpop.f32.mrf.mxu0
    %v464 = vadd.f32 %v334, %v463
    %v465 = vpop.f32.mrf.mxu0
    %v466 = vadd.f32 %v334, %v465
    %467 = vmatprep.mubr.f32.mxu0 0.0
    %468 = vmatmul.mubr.f32.gmra.mxu0 %v374
    %v469 = vpop.f32.mrf.mxu0
    %v470 = vadd.f32 %v339, %v469
    %v471 = vpop.f32.mrf.mxu0
    %v472 = vadd.f32 %v339, %v471
    %473 = vmatprep.mubr.f32.mxu0 0.0
    %474 = vmatmul.mubr.f32.gmra.mxu0 %v377
    %v475 = vpop.f32.mrf.mxu0
    %v476 = vadd.f32 %v344, %v475
    %v477 = vpop.f32.mrf.mxu0
    %v478 = vadd.f32 %v344, %v477
    %479 = vmatprep.mubr.f32.mxu0 0.0
    %480 = vmatmul.mubr.f32.gmra.mxu0 %v380
    %v481 = vpop.f32.mrf.mxu0
    %v482 = vadd.f32 %v349, %v481
    %v483 = vpop.f32.mrf.mxu0
    %v484 = vadd.f32 %v349, %v483
    %485 = vmatprep.mubr.f32.mxu0 0.0
    %486 = vmatmul.mubr.f32.gmra.mxu0 %v383
    %v487 = vpop.f32.mrf.mxu0
    %v488 = vadd.f32 %v354, %v487
    %v489 = vpop.f32.mrf.mxu0
    %v490 = vadd.f32 %v354, %v489
    %491 = vmatprep.mubr.f32.mxu0 0.0
    %492 = vmatmul.mubr.f32.gmra.mxu0 %v386
    %v493 = vpop.f32.mrf.mxu0
    %v494 = vadd.f32 %v359, %v493
    %v495 = vpop.f32.mrf.mxu0
    %v496 = vadd.f32 %v359, %v495
    %497 = vmatprep.mubr.f32.mxu0 0.0
    %498 = vmatmul.mubr.f32.gmra.mxu0 %v389
    %v499 = vpop.f32.mrf.mxu0
    %v500 = vadd.f32 %v364, %v499
    %v501 = vpop.f32.mrf.mxu0
    %v502 = vadd.f32 %v364, %v501
    %503 = vdwg.mxu0
    %v504 = vmax.f32 %v458, 0.0
    %v505 = vmax.f32 %v460, 0.0
    %v506 = vmax.f32 %v464, 0.0
    %v507 = vmax.f32 %v466, 0.0
    %v508 = vmax.f32 %v470, 0.0
    %v509 = vmax.f32 %v472, 0.0
    %v510 = vmax.f32 %v476, 0.0
    %v511 = vmax.f32 %v478, 0.0
    %v512 = vmax.f32 %v482, 0.0
    %v513 = vmax.f32 %v484, 0.0
    %v514 = vmax.f32 %v488, 0.0
    %v515 = vmax.f32 %v490, 0.0
    %v516 = vmax.f32 %v494, 0.0
    %v517 = vmax.f32 %v496, 0.0
    %v518 = vmax.f32 %v500, 0.0
    %v519 = vmax.f32 %v502, 0.0
    %v520 = vld [vmem:[%s5] sm:$0xf]
    %v521 = vld [vmem:[%s5 + $0x4] sm:$0xf]
    %v522 = vunpack.c.l.bf16 %v520
    %v523 = vunpack.c.l.bf16 %v521
    %v524 = vld [vmem:[%s6] sm:$0xff]
    %v525 = vld [vmem:[%s6 + $0x8] sm:$0xff]
    %527 = vset.pattern.permute.xlu0 0
    %528 = vperm.xlu0 %527, %v524
    %v529 = vpop.permute.xlu0 %528
    %532 = vset.pattern.permute.xlu0 0
    %533 = vperm.xlu0 %532, %v525
    %v534 = vpop.permute.xlu0 %533
    %v537 = vsel %vm366, %v522, 0
    %v540 = vsel %vm366, %v523, 0
    %542 = vmatprep.subr.mxu0 0.0
    %543 = vmatpush1.msra.mxu0 0.0
    %544 = vmatprep.subr.mxu0 0.0
    %545 = vmatpush1.msra.mxu0 0.0
    %546 = vmatprep.subr.mxu0 0.0
    %547 = vmatpush1.msra.mxu0 0.0
    %548 = vmatprep.subr.mxu0 0.0
    %549 = vmatpush1.msra.mxu0 0.0
    %550 = vmatprep.subr.mxu0 0.0
    %551 = vmatpush1.msra.mxu0 0.0
    %552 = vmatprep.subr.mxu0 0.0
    %553 = vmatpush1.msra.mxu0 0.0
    %554 = vmatprep.subr.mxu0 0.0
    %555 = vmatpush1.msra.mxu0 0.0
    %556 = vmatprep.subr.mxu0 0.0
    %557 = vmatpush1.msra.mxu0 0.0
    %558 = vmatprep.subr.mxu0 %v519
    %559 = vmatpush1.msra.mxu0 %v518
    %560 = vmatprep.subr.mxu0 %v517
    %561 = vmatpush1.msra.mxu0 %v516
    %562 = vmatprep.subr.mxu0 %v515
    %563 = vmatpush1.msra.mxu0 %v514
    %564 = vmatprep.subr.mxu0 %v513
    %565 = vmatpush1.msra.mxu0 %v512
    %566 = vmatprep.subr.mxu0 %v511
    %567 = vmatpush1.msra.mxu0 %v510
    %568 = vmatprep.subr.mxu0 %v509
    %569 = vmatpush1.msra.mxu0 %v508
    %570 = vmatprep.subr.mxu0 %v507
    %571 = vmatpush1.msra.mxu0 %v506
    %572 = vmatprep.subr.mxu0 %v505
    %573 = vmatpush1.msra.mxu0 %v504
    %574 = vmatprep.subr.mxu0 0.0
    %575 = vmatpush2.msra.mxu0 0.0
    %576 = vmatprep.subr.mxu0 0.0
    %577 = vmatpush2.msra.mxu0 0.0
    %578 = vmatprep.subr.mxu0 0.0
    %579 = vmatpush2.msra.mxu0 0.0
    %580 = vmatprep.subr.mxu0 0.0
    %581 = vmatpush2.msra.mxu0 0.0
    %582 = vmatprep.subr.mxu0 0.0
    %583 = vmatpush2.msra.mxu0 0.0
    %584 = vmatprep.subr.mxu0 0.0
    %585 = vmatpush2.msra.mxu0 0.0
    %586 = vmatprep.subr.mxu0 0.0
    %587 = vmatpush2.msra.mxu0 0.0
    %588 = vmatprep.subr.mxu0 0.0
    %589 = vmatpush2.msra.mxu0 0.0
    %590 = vmatprep.subr.mxu0 0.0
    %591 = vmatpush2.msra.mxu0 0.0
    %592 = vmatprep.subr.mxu0 0.0
    %593 = vmatpush2.msra.mxu0 0.0
    %594 = vmatprep.subr.mxu0 0.0
    %595 = vmatpush2.msra.mxu0 0.0
    %596 = vmatprep.subr.mxu0 0.0
    %597 = vmatpush2.msra.mxu0 0.0
    %598 = vmatprep.subr.mxu0 0.0
    %599 = vmatpush2.msra.mxu0 0.0
    %600 = vmatprep.subr.mxu0 0.0
    %601 = vmatpush2.msra.mxu0 0.0
    %602 = vmatprep.subr.mxu0 0.0
    %603 = vmatpush2.msra.mxu0 0.0
    %604 = vmatprep.subr.mxu0 0.0
    %605 = vmatpush2.msra.mxu0 0.0
    %606 = vmatprep.mubr.f32.mxu0 0.0
    %607 = vmatmul.mubr.f32.gmra.mxu0 %v537
    %v608 = vpop.f32.mrf.mxu0
    %v609 = vadd.f32 %v529, %v608
    %v610 = vpop.f32.mrf.mxu0
    %v611 = vadd.f32 %v529, %v610
    %612 = vmatprep.mubr.f32.mxu0 0.0
    %613 = vmatmul.mubr.f32.gmra.mxu0 %v540
    %v614 = vpop.f32.mrf.mxu0
    %v615 = vadd.f32 %v534, %v614
    %v616 = vpop.f32.mrf.mxu0
    %v617 = vadd.f32 %v534, %v616
    %618 = vdwg.mxu0
    %619 = vst [vmem:[#allocation2] sm:$0xff] %v609
    %620 = vst [vmem:[#allocation2 + $0x8] sm:$0xff] %v611
    %621 = vst [vmem:[#allocation2 + $0x10] sm:$0xff] %v615
    %622 = vst [vmem:[#allocation2 + $0x18] sm:$0xff] %v617
    // Predicated region
    $region30: #{tpu_custom_call.1} parent=1 // pred_check
      _
    $region31: #{tpu_custom_call.1} parent=1 // pred_check_branch
      %624 = sbr.rel (0) target = $region33
    $region32: #{tpu_custom_call.1} parent=1 // pred_region
      %s626 = ssub.s32 512, 512
      %627 = vsyncadd [#allocation3], %s626
      %s628 = sshll.u32 [#allocation2], 4
      %s629 = int_to_ptr.vmem [resolvable:$true] %s628
      %634 = dma.vmem_to_hbm [thread:$0]  %s629, 512, %s7, [#allocation3], 256, 256, 16
    $region33: #{tpu_custom_call.1} parent=1 // pred_fallthru
      _
    // Predicated region
    $region34: #{tpu_custom_call.1} parent=1 // pred_check
      _
    $region35: #{tpu_custom_call.1} parent=1 // pred_check_branch
      %636 = sbr.rel (0) target = $region37
    $region36: #{tpu_custom_call.1} parent=1 // pred_region
      %637 = dma.done [#allocation3], 512
    $region37: #{tpu_custom_call.1} parent=1 // pred_fallthru
      _
    %638 = vsyncpa [#allocation3], 1

</llo_original>
